<compile_context>
chip_gen: v7x
topology: tpu7x:2x2x1
jax: 0.10.0
libtpu: 0.0.40
codegen_flags: <defaults>
</compile_context>

<pallas_src>
from enum import Enum
from functools import partial

import jax
import jax.numpy as jnp
from jax.experimental import pallas as pl
from jax.experimental.pallas import tpu as pltpu

LANE = 128
SUBLANE = 8
TARGET_BLOCK_BYTES = 2 << 20          # ~2 MiB per streamed block


def _block_rows_for(dtype, rows):
    """Largest row count giving ~TARGET_BLOCK_BYTES per (rows, 128) block."""
    itemsize = jnp.dtype(dtype).itemsize
    br = (TARGET_BLOCK_BYTES // (LANE * itemsize)) // SUBLANE * SUBLANE
    br = max(SUBLANE, br)
    return min(br, rows)


def _pick_acc_rows(block_rows):
    """Accumulator height: widest of 64/32/16/8 that divides block_rows."""
    for cand in (64, 32, 16, 8):
        if block_rows % cand == 0:
            return cand
    return block_rows                 # tiny / irregular tensors: single block anyway


# ----------------------------------------------------------------------------
# Kernel 1: global min / max reduction (ANALYSIS mode encoding-stats update)
# ----------------------------------------------------------------------------
def _minmax_kernel(x_ref, mn_ref, mx_ref, *, full_rows, rem, rows_per_core,
                   block_rows, acc_rows):
    c = pl.program_id(0)              # core-split index (size 1 or 2)
    i = pl.program_id(1)              # block within this core's slice (reduction axis)

    @pl.when(i == 0)
    def _():
        mn_ref[...] = jnp.full(mn_ref.shape, jnp.inf, jnp.float32)
        mx_ref[...] = jnp.full(mx_ref.shape, -jnp.inf, jnp.float32)

    x = x_ref[...].reshape(block_rows, LANE).astype(jnp.float32)
    row0 = c * rows_per_core + i * block_rows          # global row of this block
    fully_valid = row0 + block_rows <= full_rows       # scalar, row-based (no overflow)

    def _accum(x_for_min, x_for_max):
        # Split the block into block_rows//acc_rows independent partial reductions
        # (VALU), accumulated into a wide (acc_rows, 128) resident accumulator.
        x3n = x_for_min.reshape(block_rows // acc_rows, acc_rows, LANE)
        x3x = x_for_max.reshape(block_rows // acc_rows, acc_rows, LANE)
        mn_ref[...] = jnp.minimum(mn_ref[...], jnp.min(x3n, axis=0)[None])
        mx_ref[...] = jnp.maximum(mx_ref[...], jnp.max(x3x, axis=0)[None])

    @pl.when(fully_valid)
    def _():
        _accum(x, x)

    @pl.when(jnp.logical_not(fully_valid))
    def _():
        # Cold path: only the trailing partial block lands here.
        g_row = jax.lax.broadcasted_iota(jnp.int32, (block_rows, LANE), 0) + row0
        if rem:   # static: only ragged (n % 128 != 0) tensors trace the lane mask
            lane = jax.lax.broadcasted_iota(jnp.int32, (block_rows, LANE), 1)
            valid = jnp.logical_or(
                g_row < full_rows,
                jnp.logical_and(g_row == full_rows, lane < rem))
        else:
            valid = g_row < full_rows
        _accum(jnp.where(valid, x, jnp.inf), jnp.where(valid, x, -jnp.inf))


def tensor_min_max(x):
    """Global (per-tensor) min and max via a Pallas streaming reduction."""
    flat = x.reshape(-1)                      # reshape of contiguous data: free view
    n = flat.shape[0]
    if n == 0:
        return jnp.float32(jnp.inf), jnp.float32(-jnp.inf)

    rem = n % LANE
    if rem:
        # TODO(synk): ragged (< rare) path still pays one XLA pad copy.
        flat = jnp.pad(flat, (0, LANE - rem))
    rows = flat.shape[0] // LANE
    full_rows = n // LANE                     # rows that are entirely valid data

    max_block_rows = _block_rows_for(flat.dtype, rows)
    # 2-way core split (v7x megacore) only when each half still gets full blocks.
    split = (rows % 2 == 0) and (rows // 2 >= max_block_rows)
    ncore = 2 if split else 1
    rows_per_core = rows // ncore
    block_rows = min(max_block_rows, rows_per_core)
    nb = pl.cdiv(rows_per_core, block_rows)
    acc_rows = _pick_acc_rows(block_rows)

    x3d = flat.reshape(ncore, rows_per_core, LANE)
    kernel = partial(_minmax_kernel, full_rows=full_rows, rem=rem,
                     rows_per_core=rows_per_core, block_rows=block_rows,
                     acc_rows=acc_rows)

    mn_p, mx_p = pl.pallas_call(
        kernel,
        out_shape=(
            jax.ShapeDtypeStruct((ncore, acc_rows, LANE), jnp.float32),
            jax.ShapeDtypeStruct((ncore, acc_rows, LANE), jnp.float32),
        ),
        grid_spec=pltpu.PrefetchScalarGridSpec(
            num_scalar_prefetch=0,
            grid=(ncore, nb),
            in_specs=[pl.BlockSpec((1, block_rows, LANE), lambda c, i: (c, i, 0))],
            out_specs=[
                pl.BlockSpec((1, acc_rows, LANE), lambda c, i: (c, 0, 0)),
                pl.BlockSpec((1, acc_rows, LANE), lambda c, i: (c, 0, 0)),
            ],
        ),
        compiler_params=pltpu.CompilerParams(
            dimension_semantics=("parallel", "arbitrary")),
    )(x3d)

    # Tiny (<=2,64,128) partials: the single cross-lane reduce, in plain XLA.
    return jnp.min(mn_p), jnp.max(mx_p)


# ----------------------------------------------------------------------------
# Kernel 2: per-tensor quantize-dequantize (ACTIVE mode, ROUND_NEAREST)
# ----------------------------------------------------------------------------
def _qdq_kernel(enc_ref, x_ref, o_ref):
    # Scalars live in SMEM; hoisted once per block.
    inv_delta = enc_ref[0]
    delta = enc_ref[1]
    offset = enc_ref[2]
    num_steps = enc_ref[3]
    x = x_ref[...].astype(jnp.float32)
    s = x * inv_delta                                    # reciprocal-multiply, not divide
    # ROUND_NEAREST (half away from zero), matching AIMET's roundf behaviour.
    r = jnp.sign(s) * jnp.floor(jnp.abs(s) + 0.5)
    q = jnp.clip(r - offset, 0.0, num_steps)
    o_ref[...] = ((q + offset) * delta).astype(o_ref.dtype)


def quantize_dequantize(x, encoding, donate_input=False):
    """encoding = f32[4] (inv_delta, delta, offset, num_steps); returns QDQ(x)."""
    orig_shape, orig_dtype = x.shape, x.dtype
    flat = x.reshape(-1)                      # native dtype in, native dtype out
    n = flat.shape[0]
    if n == 0:
        return x

    rem = n % LANE
    if rem:
        # TODO(synk): ragged path pays an XLA pad + slice copy; 128-multiple sizes skip it.
        flat = jnp.pad(flat, (0, LANE - rem))
    rows = flat.shape[0] // LANE
    block_rows = _block_rows_for(orig_dtype, rows)
    grid = (pl.cdiv(rows, block_rows),)
    x2d = flat.reshape(rows, LANE)

    kwargs = {}
    if donate_input:
        # Alias the activation buffer to the output (only when the caller donates it).
        kwargs["input_output_aliases"] = {1: 0}

    out2d = pl.pallas_call(
        _qdq_kernel,
        out_shape=jax.ShapeDtypeStruct((rows, LANE), orig_dtype),
        grid_spec=pltpu.PrefetchScalarGridSpec(
            num_scalar_prefetch=0,
            grid=grid,
            in_specs=[
                pl.BlockSpec(memory_space=pltpu.MemorySpace.SMEM),   # f32[4] encodings
                pl.BlockSpec((block_rows, LANE), lambda i: (i, 0)),
            ],
            out_specs=pl.BlockSpec((block_rows, LANE), lambda i: (i, 0)),
        ),
        compiler_params=pltpu.CompilerParams(
            dimension_semantics=("parallel",)),     # megacore-shardable on v7x
        **kwargs,
    )(encoding, x2d)

    out_flat = out2d.reshape(-1)
    if rem:
        out_flat = out_flat[:n]
    return out_flat.reshape(orig_shape)


# ----------------------------------------------------------------------------
# Python-side module emulating QcQuantizeStandAloneBase semantics
# ----------------------------------------------------------------------------
class QcQuantizeOpMode(Enum):
    PASSTHROUGH = 1
    ANALYSIS = 2
    ACTIVE = 3
    LEARN_ENCODINGS = 4


class PallasPerTensorQuantizer:
    """Minimal StaticGridPerTensorQuantizer equivalent (post_training_tf, int)."""

    def __init__(self, bitwidth, is_symmetric, enabled_by_default=True):
        self.bitwidth = bitwidth
        self.is_symmetric = is_symmetric
        self.enabled = enabled_by_default
        self.round_mode = "nearest"
        self._stat_min = None
        self._stat_max = None
        self.encoding = None  # f32[4] = (inv_delta, delta, offset, num_steps)

    def update_encoding_stats(self, x):
        # Exactly one HBM read of the activation (the floor for ANALYSIS mode).
        mn, mx = tensor_min_max(x)
        if self._stat_min is None:
            self._stat_min, self._stat_max = mn, mx
        else:
            self._stat_min = jnp.minimum(self._stat_min, mn)
            self._stat_max = jnp.maximum(self._stat_max, mx)

    def compute_encoding(self):
        assert self._stat_min is not None, "no encoding stats collected"
        num_steps = 2.0 ** self.bitwidth - 1.0
        mn = jnp.minimum(self._stat_min, 0.0)  # grid must include zero
        mx = jnp.maximum(self._stat_max, 0.0)
        if self.is_symmetric:
            abs_max = jnp.maximum(jnp.abs(mn), jnp.abs(mx))
            half_steps = jnp.floor(num_steps / 2.0)
            delta = jnp.maximum(abs_max / half_steps, 1e-8)
            offset = -jnp.ceil(num_steps / 2.0)
        else:
            delta = jnp.maximum((mx - mn) / num_steps, 1e-8)
            offset = jnp.round(mn / delta)
        inv_delta = 1.0 / delta                 # reciprocal computed once, not per element
        self.encoding = jnp.stack(
            [inv_delta, delta, offset, jnp.float32(num_steps)]).astype(jnp.float32)

    def quantize_dequantize(self, x):
        assert self.encoding is not None, "encoding not computed"
        return quantize_dequantize(x, self.encoding)


def tensor_quantizer_factory(bitwidth, round_mode, quant_scheme, use_symmetric_encodings,
                             enabled_by_default, data_type=None):
    # TODO(synk): LearnedGridTensorQuantizer (range-learning) and tf_enhanced
    # histogram stats have no Pallas equivalent here; only static-grid per-tensor.
    return PallasPerTensorQuantizer(bitwidth, use_symmetric_encodings, enabled_by_default)


class QcQuantizeStandAlone:
    """Pallas-backed equivalent of QcQuantizeStandAloneBase (concrete forward)."""

    def __init__(self, activation_bw=8, round_mode="nearest",
                 quant_scheme="post_training_tf", is_symmetric=False, data_type="int"):
        self.output_quantizers = [
            tensor_quantizer_factory(activation_bw, round_mode, quant_scheme,
                                     is_symmetric, enabled_by_default=True,
                                     data_type=data_type)
        ]
        self._mode = QcQuantizeOpMode.ANALYSIS
        self.training = False  # nn.Module.training analogue; eval => ROUND_NEAREST

    def set_output_bw(self, output_bw):
        self.output_quantizers[0].bitwidth = output_bw

    def set_mode(self, mode):
        self._mode = mode

    def compute_encodings(self):
        for q in self.output_quantizers:
            q.compute_encoding()

    def forward(self, *inputs):
        return self._quantize_activation(self.output_quantizers, list(inputs))

    __call__ = forward

    def _quantize_activation(self, tensor_quantizers, tensors_to_quantize):
        outputs = []
        for index, input_tensor in enumerate(tensors_to_quantize):
            if self._mode is QcQuantizeOpMode.ANALYSIS:
                tensor_quantizers[index].update_encoding_stats(input_tensor)
                output = input_tensor            # passthrough, no identity copy
            elif self._mode is QcQuantizeOpMode.ACTIVE:
                # eval mode -> ROUND_NEAREST (the quantizer's nearest rounding)
                output = tensor_quantizers[index].quantize_dequantize(input_tensor)
            else:  # PASSTHROUGH / LEARN_ENCODINGS handled elsewhere in AIMET
                output = input_tensor
            outputs.append(output)
        if len(outputs) == 1:
            outputs = outputs[0]
        return outputs


# ----------------------------------------------------------------------------
# demo / self-check
# ----------------------------------------------------------------------------
if __name__ == "__main__":
    key = jax.random.PRNGKey(0)
    # NCHW activation: batch=2, channels=4, spatial=16x16 (2048 elems -> zero-copy path)
    x = jax.random.normal(key, (2, 4, 16, 16), dtype=jnp.float32) * 3.0

    # 0) standalone check of the min/max reduction kernel
    mn, mx = jax.block_until_ready(tensor_min_max(x))
    assert jnp.allclose(mn, jnp.min(x)) and jnp.allclose(mx, jnp.max(x)), "min/max kernel mismatch"

    op = QcQuantizeStandAlone(activation_bw=8, is_symmetric=False)

    # 1) ANALYSIS pass: collect min/max stats, output == input (passthrough)
    y_analysis = jax.block_until_ready(op(x))
    assert jnp.array_equal(y_analysis, x), "ANALYSIS mode must pass input through"

    # 2) compute encodings and switch to ACTIVE (quantize-dequantize)
    op.compute_encodings()
    op.set_mode(QcQuantizeOpMode.ACTIVE)
    y_active = jax.block_until_ready(op(x))

    # reference QDQ in plain JAX (same reciprocal-multiply / half-away-from-zero rounding)
    inv_delta, delta, offset, num_steps = (float(v) for v in op.output_quantizers[0].encoding)

    def ref_qdq(t):
        s = t * inv_delta
        r = jnp.sign(s) * jnp.floor(jnp.abs(s) + 0.5)
        q = jnp.clip(r - offset, 0.0, num_steps)
        return (q + offset) * delta

    ref = ref_qdq(x)
    assert y_active.shape == x.shape and y_active.dtype == x.dtype
    assert jnp.allclose(y_active, ref, atol=1e-5), "QDQ kernel mismatch vs reference"

    # 3) ragged (non-128-multiple) shape exercises the in-kernel tail masking
    x_odd = jax.random.normal(jax.random.PRNGKey(1), (3, 5, 7), dtype=jnp.float32)
    mn2, mx2 = jax.block_until_ready(tensor_min_max(x_odd))
    assert jnp.allclose(mn2, jnp.min(x_odd)) and jnp.allclose(mx2, jnp.max(x_odd))
    y_odd = jax.block_until_ready(quantize_dequantize(x_odd, op.output_quantizers[0].encoding))
    assert y_odd.shape == x_odd.shape and jnp.allclose(y_odd, ref_qdq(x_odd), atol=1e-5)

    # 4) 128-multiple but non-block-multiple row count exercises the partial-block path
    x_long = jax.random.normal(jax.random.PRNGKey(2), (40, 128), dtype=jnp.float32) * 2.0
    mn3, mx3 = jax.block_until_ready(tensor_min_max(x_long))
    assert jnp.allclose(mn3, jnp.min(x_long)) and jnp.allclose(mx3, jnp.max(x_long))
    y_long = jax.block_until_ready(quantize_dequantize(x_long, op.output_quantizers[0].encoding))
    assert jnp.allclose(y_long, ref_qdq(x_long), atol=1e-5)

    # 5) PASSTHROUGH mode sanity
    op.set_mode(QcQuantizeOpMode.PASSTHROUGH)
    y_pt = jax.block_until_ready(op(x))
    assert jnp.array_equal(y_pt, x)

    print("KERNEL_OK")
</pallas_src>

<mosaic_0001>
module attributes {stable_mosaic.version = 11 : i64} {
  func.func @_minmax_kernel(%arg0: i32, %arg1: i32, %arg2: memref<1x16x128xf32, #tpu.memory_space<vmem>>, %arg3: memref<1x16x128xf32, #tpu.memory_space<vmem>>, %arg4: memref<1x16x128xf32, #tpu.memory_space<vmem>>) attributes {dimension_semantics = [#tpu.dimension_semantics<parallel>, #tpu.dimension_semantics<arbitrary>], iteration_bounds = array<i64: 1, 1>, scalar_prefetch = 0 : i64, scratch_operands = 0 : i64, tpu.core_type = #tpu.core_type<tc>, window_params = [{transform_indices = @transform_0, window_bounds = array<i64: 1, 16, 128>}, {transform_indices = @transform_1, window_bounds = array<i64: 1, 16, 128>}, {transform_indices = @transform_2, window_bounds = array<i64: 1, 16, 128>}]} {
    %c0_i32 = arith.constant 0 : i32
    %0 = arith.cmpi eq, %arg1, %c0_i32 : i32
    %1 = arith.extui %0 : i1 to i32
    %c0_i32_0 = arith.constant 0 : i32
    %2 = arith.cmpi ne, %1, %c0_i32_0 : i32
    scf.if %2 {
      %cst = arith.constant 0x7F800000 : f32
      %15 = vector.broadcast %cst : f32 to vector<1x16x128xf32>
      %c0_8 = arith.constant 0 : index
      %c0_9 = arith.constant 0 : index
      %c0_10 = arith.constant 0 : index
      %16 = vector.load %arg3[%c0_8, %c0_9, %c0_10] : memref<1x16x128xf32, #tpu.memory_space<vmem>>, vector<1x16x128xf32>
      tpu.vector_store %arg3[%c0_8, %c0_9, %c0_10], %15 {strides = array<i32>} : memref<1x16x128xf32, #tpu.memory_space<vmem>>, vector<1x16x128xf32>,
      %cst_11 = arith.constant 0xFF800000 : f32
      %17 = vector.broadcast %cst_11 : f32 to vector<1x16x128xf32>
      %c0_12 = arith.constant 0 : index
      %c0_13 = arith.constant 0 : index
      %c0_14 = arith.constant 0 : index
      %18 = vector.load %arg4[%c0_12, %c0_13, %c0_14] : memref<1x16x128xf32, #tpu.memory_space<vmem>>, vector<1x16x128xf32>
      tpu.vector_store %arg4[%c0_12, %c0_13, %c0_14], %17 {strides = array<i32>} : memref<1x16x128xf32, #tpu.memory_space<vmem>>, vector<1x16x128xf32>,
    } else {
    }
    %c0 = arith.constant 0 : index
    %c0_1 = arith.constant 0 : index
    %c0_2 = arith.constant 0 : index
    %3 = vector.load %arg2[%c0, %c0_1, %c0_2] : memref<1x16x128xf32, #tpu.memory_space<vmem>>, vector<1x16x128xf32>
    %4 = vector.shape_cast %3 : vector<1x16x128xf32> to vector<16x128xf32>
    %c16_i32 = arith.constant 16 : i32
    %5 = arith.muli %arg0, %c16_i32 : i32
    %c16_i32_3 = arith.constant 16 : i32
    %6 = arith.muli %arg1, %c16_i32_3 : i32
    %7 = arith.addi %5, %6 : i32
    %c16_i32_4 = arith.constant 16 : i32
    %8 = arith.addi %7, %c16_i32_4 : i32
    %c16_i32_5 = arith.constant 16 : i32
    %9 = arith.cmpi sle, %8, %c16_i32_5 : i32
    %10 = arith.extui %9 : i1 to i32
    %c0_i32_6 = arith.constant 0 : i32
    %11 = arith.cmpi ne, %10, %c0_i32_6 : i32
    scf.if %11 {
      %15 = vector.shape_cast %4 : vector<16x128xf32> to vector<1x16x128xf32>
      %16 = vector.shape_cast %4 : vector<16x128xf32> to vector<1x16x128xf32>
      %c0_8 = arith.constant 0 : index
      %c0_9 = arith.constant 0 : index
      %c0_10 = arith.constant 0 : index
      %17 = vector.load %arg3[%c0_8, %c0_9, %c0_10] : memref<1x16x128xf32, #tpu.memory_space<vmem>>, vector<1x16x128xf32>
      %cst = arith.constant dense<0x7F800000> : vector<16x128xf32>
      %18 = vector.multi_reduction <minimumf>, %15, %cst [0] : vector<1x16x128xf32> to vector<16x128xf32>
      %19 = vector.shape_cast %18 : vector<16x128xf32> to vector<1x16x128xf32>
      %20 = arith.minimumf %17, %19 : vector<1x16x128xf32>
      %c0_11 = arith.constant 0 : index
      %c0_12 = arith.constant 0 : index
      %c0_13 = arith.constant 0 : index
      %21 = vector.load %arg3[%c0_11, %c0_12, %c0_13] : memref<1x16x128xf32, #tpu.memory_space<vmem>>, vector<1x16x128xf32>
      tpu.vector_store %arg3[%c0_11, %c0_12, %c0_13], %20 {strides = array<i32>} : memref<1x16x128xf32, #tpu.memory_space<vmem>>, vector<1x16x128xf32>,
      %c0_14 = arith.constant 0 : index
      %c0_15 = arith.constant 0 : index
      %c0_16 = arith.constant 0 : index
      %22 = vector.load %arg4[%c0_14, %c0_15, %c0_16] : memref<1x16x128xf32, #tpu.memory_space<vmem>>, vector<1x16x128xf32>
      %cst_17 = arith.constant dense<0xFF800000> : vector<16x128xf32>
      %23 = vector.multi_reduction <maximumf>, %16, %cst_17 [0] : vector<1x16x128xf32> to vector<16x128xf32>
      %24 = vector.shape_cast %23 : vector<16x128xf32> to vector<1x16x128xf32>
      %25 = arith.maximumf %22, %24 : vector<1x16x128xf32>
      %c0_18 = arith.constant 0 : index
      %c0_19 = arith.constant 0 : index
      %c0_20 = arith.constant 0 : index
      %26 = vector.load %arg4[%c0_18, %c0_19, %c0_20] : memref<1x16x128xf32, #tpu.memory_space<vmem>>, vector<1x16x128xf32>
      tpu.vector_store %arg4[%c0_18, %c0_19, %c0_20], %25 {strides = array<i32>} : memref<1x16x128xf32, #tpu.memory_space<vmem>>, vector<1x16x128xf32>,
    } else {
    }
    %true = arith.constant true
    %12 = arith.xori %9, %true : i1
    %13 = arith.extui %12 : i1 to i32
    %c0_i32_7 = arith.constant 0 : i32
    %14 = arith.cmpi ne, %13, %c0_i32_7 : i32
    scf.if %14 {
      %15 = tpu.iota {dimensions = array<i32: 0>} : vector<16x128xi32>
      %16 = vector.broadcast %7 : i32 to vector<16x128xi32>
      %17 = arith.addi %15, %16 : vector<16x128xi32>
      %c16_i32_8 = arith.constant 16 : i32
      %18 = vector.broadcast %c16_i32_8 : i32 to vector<16x128xi32>
      %19 = arith.cmpi slt, %17, %18 : vector<16x128xi32>
      %cst = arith.constant 0x7F800000 : f32
      %20 = vector.broadcast %cst : f32 to vector<16x128xf32>
      %21 = arith.select %19, %4, %20 : vector<16x128xi1>, vector<16x128xf32>
      %cst_9 = arith.constant 0xFF800000 : f32
      %22 = vector.broadcast %cst_9 : f32 to vector<16x128xf32>
      %23 = arith.select %19, %4, %22 : vector<16x128xi1>, vector<16x128xf32>
      %24 = vector.shape_cast %21 : vector<16x128xf32> to vector<1x16x128xf32>
      %25 = vector.shape_cast %23 : vector<16x128xf32> to vector<1x16x128xf32>
      %c0_10 = arith.constant 0 : index
      %c0_11 = arith.constant 0 : index
      %c0_12 = arith.constant 0 : index
      %26 = vector.load %arg3[%c0_10, %c0_11, %c0_12] : memref<1x16x128xf32, #tpu.memory_space<vmem>>, vector<1x16x128xf32>
      %cst_13 = arith.constant dense<0x7F800000> : vector<16x128xf32>
      %27 = vector.multi_reduction <minimumf>, %24, %cst_13 [0] : vector<1x16x128xf32> to vector<16x128xf32>
      %28 = vector.shape_cast %27 : vector<16x128xf32> to vector<1x16x128xf32>
      %29 = arith.minimumf %26, %28 : vector<1x16x128xf32>
      %c0_14 = arith.constant 0 : index
      %c0_15 = arith.constant 0 : index
      %c0_16 = arith.constant 0 : index
      %30 = vector.load %arg3[%c0_14, %c0_15, %c0_16] : memref<1x16x128xf32, #tpu.memory_space<vmem>>, vector<1x16x128xf32>
      tpu.vector_store %arg3[%c0_14, %c0_15, %c0_16], %29 {strides = array<i32>} : memref<1x16x128xf32, #tpu.memory_space<vmem>>, vector<1x16x128xf32>,
      %c0_17 = arith.constant 0 : index
      %c0_18 = arith.constant 0 : index
      %c0_19 = arith.constant 0 : index
      %31 = vector.load %arg4[%c0_17, %c0_18, %c0_19] : memref<1x16x128xf32, #tpu.memory_space<vmem>>, vector<1x16x128xf32>
      %cst_20 = arith.constant dense<0xFF800000> : vector<16x128xf32>
      %32 = vector.multi_reduction <maximumf>, %25, %cst_20 [0] : vector<1x16x128xf32> to vector<16x128xf32>
      %33 = vector.shape_cast %32 : vector<16x128xf32> to vector<1x16x128xf32>
      %34 = arith.maximumf %31, %33 : vector<1x16x128xf32>
      %c0_21 = arith.constant 0 : index
      %c0_22 = arith.constant 0 : index
      %c0_23 = arith.constant 0 : index
      %35 = vector.load %arg4[%c0_21, %c0_22, %c0_23] : memref<1x16x128xf32, #tpu.memory_space<vmem>>, vector<1x16x128xf32>
      tpu.vector_store %arg4[%c0_21, %c0_22, %c0_23], %34 {strides = array<i32>} : memref<1x16x128xf32, #tpu.memory_space<vmem>>, vector<1x16x128xf32>,
    } else {
    }
    return
  }
  func.func @transform_0(%arg0: i32, %arg1: i32) -> (i32, i32, i32) {
    %c0_i32 = arith.constant 0 : i32
    %c0_i32_0 = arith.constant 0 : i32
    return %arg0, %arg1, %c0_i32 : i32, i32, i32
  }
  func.func @transform_1(%arg0: i32, %arg1: i32) -> (i32, i32, i32) {
    %c0_i32 = arith.constant 0 : i32
    %c0_i32_0 = arith.constant 0 : i32
    %c0_i32_1 = arith.constant 0 : i32
    return %arg0, %c0_i32, %c0_i32_0 : i32, i32, i32
  }
  func.func @transform_2(%arg0: i32, %arg1: i32) -> (i32, i32, i32) {
    %c0_i32 = arith.constant 0 : i32
    %c0_i32_0 = arith.constant 0 : i32
    %c0_i32_1 = arith.constant 0 : i32
    return %arg0, %c0_i32, %c0_i32_0 : i32, i32, i32
  }
}

</mosaic_0001>

<llo_original>
// kernel: tpu_custom_call.1
$region0: #{tpu_custom_call.1}
  #allocation0 [shape = 'u32[]', space=smem, size = 0x4, offset = 0x4, fixed_abs, tag = 'smem constant byte address 0x4 - core index']
  #allocation1 [shape = 'u32[144,128]{1,0:T(1,128)}', space=vmem, size = 0x12000, scoped, tag = 'internal scratch']
  %s0 = inlined_call_operand.hbm [shape: f32[1,16,128], index: 0, kind: input, shape index: {}]
  %s1 = inlined_call_operand.hbm [shape: f32[1,16,128], index: 1, kind: output, shape index: {0}]
  %s2 = inlined_call_operand.hbm [shape: f32[1,16,128], index: 2, kind: output, shape index: {1}]
  %3 = xla_tuple %s1, %s2
  %s4 = sld [smem:[#allocation0]]
  $region38: #{tpu_custom_call.1} parent=0
    _
  %s6 = ssub.s32 1, %s4
  %s7 = scalar_select 0, %s6, %s4
  $region1: #{tpu_custom_call.1} parent=0
    #allocation2 [shape = 'u8[8192]{0}', space=vmem, size = 0x2000, scoped, tag = 'input window, operand 0, single buffered']
    #allocation3 [shape = 's32[1]{0}', space=sflag, size = 0x4, scoped, tag = 'scoped memory for tpu_custom_call.1']
    #allocation4 [shape = 's32[1]{0}', space=sflag, size = 0x4, scoped, tag = 'scoped memory for tpu_custom_call.1']
    #allocation5 [shape = 'u8[8192]{0}', space=vmem, size = 0x2000, scoped, tag = 'output window, operand 0, single buffered']
    #allocation6 [shape = 'u8[8192]{0}', space=vmem, size = 0x2000, scoped, tag = 'output window, operand 1, single buffered']
    #allocation7 [shape = 's32[1]{0}', space=sflag, size = 0x4, scoped, tag = 'scoped memory for tpu_custom_call.1']
    %8 = vsyncpa [#allocation3], 0
    %9 = vsyncpa [#allocation4], 0
    %10 = vsyncpa [#allocation7], 0
    // Predicated region
    $region2: #{tpu_custom_call.1} parent=1 // pred_check
      _
    $region3: #{tpu_custom_call.1} parent=1 // pred_check_branch
      %12 = sbr.rel (0) target = $region5
    $region4: #{tpu_custom_call.1} parent=1 // pred_region
      %s14 = ssub.s32 256, 256
      %15 = vsyncadd [#allocation3], %s14
      %s16 = sshll.u32 [#allocation2], 4
      %s17 = int_to_ptr.vmem [resolvable:$true] %s16
      %22 = dma.hbm_to_vmem [thread:$0]  %s0, 256, %s17, [#allocation3], 128, 128, 8
    $region5: #{tpu_custom_call.1} parent=1 // pred_fallthru
      _
    // Predicated region
    $region6: #{tpu_custom_call.1} parent=1 // pred_check
      _
    $region7: #{tpu_custom_call.1} parent=1 // pred_check_branch
      %24 = sbr.rel (0) target = $region9
    $region8: #{tpu_custom_call.1} parent=1 // pred_region
      %25 = dma.done [#allocation3], 256
    $region9: #{tpu_custom_call.1} parent=1 // pred_fallthru
      _
    %p26 = scmp.eq.s32.totalorder 0, 0
    // Predicated region
    $region10: #{tpu_custom_call.1} parent=1 // pred_check
      %p27 = pneg %p26
    $region11: #{tpu_custom_call.1} parent=1 // pred_check_branch
      %29 = sbr.rel (%p27) target = $region13
    $region12: #{tpu_custom_call.1} parent=1 // pred_region
      %30 = vst [vmem:[#allocation5] sm:$0xff] inf
      %31 = vst [vmem:[#allocation5 + $0x8] sm:$0xff] inf
      %32 = vst [vmem:[#allocation6] sm:$0xff] -inf
      %33 = vst [vmem:[#allocation6 + $0x8] sm:$0xff] -inf
    $region13: #{tpu_custom_call.1} parent=1 // pred_fallthru
      _
    %v34 = vld [vmem:[#allocation2] sm:$0xff]
    %v35 = vld [vmem:[#allocation2 + $0x8] sm:$0xff]
    %s36 = smul.u32 0, 16
    %s37 = smul.u32 0, 16
    %s38 = sadd.s32 %s36, %s37
    %s39 = sadd.s32 %s38, 16
    %p40 = scmp.le.s32.totalorder %s39, 16
    // Predicated region
    $region14: #{tpu_custom_call.1} parent=1 // pred_check
      %p41 = pneg %p40
    $region15: #{tpu_custom_call.1} parent=1 // pred_check_branch
      %43 = sbr.rel (%p41) target = $region17
    $region16: #{tpu_custom_call.1} parent=1 // pred_region
      %v44 = vld [vmem:[#allocation5] sm:$0xff]
      %v45 = vld [vmem:[#allocation5 + $0x8] sm:$0xff]
      %v46 = vmin.f32 %v44, %v34
      %v47 = vmin.f32 %v45, %v35
      %48 = vst [vmem:[#allocation5] sm:$0xff] %v46
      %49 = vst [vmem:[#allocation5 + $0x8] sm:$0xff] %v47
      %v50 = vld [vmem:[#allocation6] sm:$0xff]
      %v51 = vld [vmem:[#allocation6 + $0x8] sm:$0xff]
      %v52 = vmax.f32 %v50, %v34
      %v53 = vmax.f32 %v51, %v35
      %54 = vst [vmem:[#allocation6] sm:$0xff] %v52
      %55 = vst [vmem:[#allocation6 + $0x8] sm:$0xff] %v53
    $region17: #{tpu_custom_call.1} parent=1 // pred_fallthru
      _
    %p56 = scmp.gt.s32.totalorder %s39, 16
    // Predicated region
    $region18: #{tpu_custom_call.1} parent=1 // pred_check
      %p57 = pneg %p56
    $region19: #{tpu_custom_call.1} parent=1 // pred_check_branch
      %59 = sbr.rel (%p57) target = $region21
    $region20: #{tpu_custom_call.1} parent=1 // pred_region
      %v60 = vlaneseq
      %v61 = vshrl.u32 %v60, 7
      %v62 = vadd.s32 %v61, 8
      %v63 = vstv %s38
      %v64 = vadd.s32 %v61, %v63
      %v65 = vadd.s32 %v62, %v63
      %vm66 = vcmp.lt.s32.totalorder %v64, 16
      %vm67 = vcmp.lt.s32.totalorder %v65, 16
      %v68 = vsel %vm66, %v34, inf
      %v69 = vsel %vm67, %v35, inf
      %v70 = vsel %vm66, %v34, -inf
      %v71 = vsel %vm67, %v35, -inf
      %v72 = vld [vmem:[#allocation5] sm:$0xff]
      %v73 = vld [vmem:[#allocation5 + $0x8] sm:$0xff]
      %v74 = vmin.f32 %v72, %v68
      %v75 = vmin.f32 %v73, %v69
      %76 = vst [vmem:[#allocation5] sm:$0xff] %v74
      %77 = vst [vmem:[#allocation5 + $0x8] sm:$0xff] %v75
      %v78 = vld [vmem:[#allocation6] sm:$0xff]
      %v79 = vld [vmem:[#allocation6 + $0x8] sm:$0xff]
      %v80 = vmax.f32 %v78, %v70
      %v81 = vmax.f32 %v79, %v71
      %82 = vst [vmem:[#allocation6] sm:$0xff] %v80
      %83 = vst [vmem:[#allocation6 + $0x8] sm:$0xff] %v81
    $region21: #{tpu_custom_call.1} parent=1 // pred_fallthru
      _
    // Predicated region
    $region22: #{tpu_custom_call.1} parent=1 // pred_check
      _
    $region23: #{tpu_custom_call.1} parent=1 // pred_check_branch
      %85 = sbr.rel (0) target = $region25
    $region24: #{tpu_custom_call.1} parent=1 // pred_region
      %s87 = ssub.s32 256, 256
      %88 = vsyncadd [#allocation4], %s87
      %s89 = sshll.u32 [#allocation5], 4
      %s90 = int_to_ptr.vmem [resolvable:$true] %s89
      %95 = dma.vmem_to_hbm [thread:$0]  %s90, 256, %s1, [#allocation4], 128, 128, 8
    $region25: #{tpu_custom_call.1} parent=1 // pred_fallthru
      _
    // Predicated region
    $region26: #{tpu_custom_call.1} parent=1 // pred_check
      _
    $region27: #{tpu_custom_call.1} parent=1 // pred_check_branch
      %97 = sbr.rel (0) target = $region29
    $region28: #{tpu_custom_call.1} parent=1 // pred_region
      %s99 = ssub.s32 256, 256
      %100 = vsyncadd [#allocation7], %s99
      %s101 = sshll.u32 [#allocation6], 4
      %s102 = int_to_ptr.vmem [resolvable:$true] %s101
      %107 = dma.vmem_to_hbm [thread:$0]  %s102, 256, %s2, [#allocation7], 128, 128, 8
    $region29: #{tpu_custom_call.1} parent=1 // pred_fallthru
      _
    // Predicated region
    $region30: #{tpu_custom_call.1} parent=1 // pred_check
      _
    $region31: #{tpu_custom_call.1} parent=1 // pred_check_branch
      %109 = sbr.rel (0) target = $region33
    $region32: #{tpu_custom_call.1} parent=1 // pred_region
      %110 = dma.done [#allocation4], 256
    $region33: #{tpu_custom_call.1} parent=1 // pred_fallthru
      _
    // Predicated region
    $region34: #{tpu_custom_call.1} parent=1 // pred_check
      _
    $region35: #{tpu_custom_call.1} parent=1 // pred_check_branch
      %112 = sbr.rel (0) target = $region37
    $region36: #{tpu_custom_call.1} parent=1 // pred_region
      %113 = dma.done [#allocation7], 256
    $region37: #{tpu_custom_call.1} parent=1 // pred_fallthru
      _
    %114 = vsyncpa [#allocation3], 1
    %115 = vsyncpa [#allocation4], 1
    %116 = vsyncpa [#allocation7], 1

</llo_original>
